<compile_context>
chip_gen: v6e
topology: v6e:2x2x1
jax: 0.10.0
libtpu: 0.0.40
codegen_flags: <defaults>
</compile_context>

<pallas_src>
import functools
import math

import jax
import jax.numpy as jnp
from jax.experimental import pallas as pl
from jax.experimental.pallas import tpu as pltpu


def _self_attention_kernel(x_ref, wq_ref, wk_ref, wv_ref, o_ref, *, scale):
    x = x_ref[...]                       # (S, d_in), native dtype

    # Input projections (MXU), f32 accumulation.
    q = jnp.dot(x, wq_ref[...], preferred_element_type=jnp.float32)
    k = jnp.dot(x, wk_ref[...], preferred_element_type=jnp.float32)
    v = jnp.dot(x, wv_ref[...], preferred_element_type=jnp.float32)

    # Fold 1/sqrt(d_kq) into Q (S*d_kq mults instead of S*S on the scores).
    q = q * scale

    # Scores = Q K^T without materializing K^T: contract the last dims.
    scores = jax.lax.dot_general(
        q, k,
        dimension_numbers=(((1,), (1,)), ((), ())),
        preferred_element_type=jnp.float32)          # (S, S)

    # Numerically stable softmax in f32 on the VPU/EUP.
    m = jnp.max(scores, axis=-1, keepdims=True)
    p = jnp.exp(scores - m)
    denom = jnp.sum(p, axis=-1, keepdims=True)
    inv = pl.reciprocal(denom, approx=True)          # EUP (separate slot)
    inv = inv * (2.0 - denom * inv)                  # one Newton step -> ~f32

    # Context = (P V) * inv  (normalize after the PV matmul: S*d_v mults).
    ctx = jnp.dot(p.astype(v.dtype), v, preferred_element_type=jnp.float32)
    o_ref[...] = (ctx * inv).astype(o_ref.dtype)


def self_attention(x, w_query, w_key, w_value):
    """x: (S, d_in); weights: (d_in, d_out_*). Returns (S, d_out_v)."""
    seq, d_in = x.shape
    d_out_kq = w_query.shape[1]
    d_out_v = w_value.shape[1]

    kernel = functools.partial(
        _self_attention_kernel,
        scale=1.0 / math.sqrt(d_out_kq))

    itemsize = jnp.dtype(x.dtype).itemsize
    flops = (2 * seq * d_in * (2 * d_out_kq + d_out_v)   # projections
             + 2 * seq * seq * (d_out_kq + d_out_v))     # QK^T and PV
    bytes_accessed = (x.size + w_query.size + w_key.size + w_value.size
                      + seq * d_out_v) * itemsize
    cost = pl.CostEstimate(flops=flops,
                           transcendentals=seq * seq,
                           bytes_accessed=bytes_accessed)

    # Single program, no grid: the whole (tiny) problem lives in VMEM as
    # full-array blocks; no per-step pipeline bookkeeping, no wrapper pads.
    return pl.pallas_call(
        kernel,
        out_shape=jax.ShapeDtypeStruct((seq, d_out_v), x.dtype),
        in_specs=[pl.BlockSpec(memory_space=pltpu.MemorySpace.VMEM)] * 4,
        out_specs=pl.BlockSpec(memory_space=pltpu.MemorySpace.VMEM),
        cost_estimate=cost,
    )(x, w_query, w_key, w_value)


def self_attention_ref(x, w_query, w_key, w_value, d_out_kq):
    keys = x @ w_key
    queries = x @ w_query
    values = x @ w_value
    scores = queries @ keys.T
    weights = jax.nn.softmax(scores / math.sqrt(d_out_kq), axis=-1)
    return weights @ values


if __name__ == "__main__":
    # Shapes consistent with the module's forward: x is (seq, d_in).
    seq, d_in, d_out_kq, d_out_v = 8, 32, 16, 16

    key = jax.random.PRNGKey(0)
    kx, kq, kk, kv = jax.random.split(key, 4)

    # torch.rand ~ uniform[0, 1)
    x = jax.random.uniform(kx, (seq, d_in), dtype=jnp.float32)
    w_query = jax.random.uniform(kq, (d_in, d_out_kq), dtype=jnp.float32)
    w_key = jax.random.uniform(kk, (d_in, d_out_kq), dtype=jnp.float32)
    w_value = jax.random.uniform(kv, (d_in, d_out_v), dtype=jnp.float32)

    out = self_attention(x, w_query, w_key, w_value)
    out = jax.block_until_ready(out)

    ref = self_attention_ref(x, w_query, w_key, w_value, d_out_kq)
    assert out.shape == (seq, d_out_v)
    assert jnp.allclose(out, ref, atol=5e-4, rtol=5e-4), "mismatch vs reference"

    print("KERNEL_OK")
</pallas_src>

<mosaic_0001>
module attributes {stable_mosaic.version = 11 : i64} {
  func.func @_self_attention_kernel(%arg0: memref<8x32xf32, #tpu.memory_space<vmem>>, %arg1: memref<32x16xf32, #tpu.memory_space<vmem>>, %arg2: memref<32x16xf32, #tpu.memory_space<vmem>>, %arg3: memref<32x16xf32, #tpu.memory_space<vmem>>, %arg4: memref<8x16xf32, #tpu.memory_space<vmem>>) attributes {dimension_semantics = [], scalar_prefetch = 0 : i64, scratch_operands = 0 : i64, tpu.core_type = #tpu.core_type<tc>} {
    %c0 = arith.constant 0 : index
    %c0_0 = arith.constant 0 : index
    %0 = vector.load %arg0[%c0, %c0_0] : memref<8x32xf32, #tpu.memory_space<vmem>>, vector<8x32xf32>
    %c0_1 = arith.constant 0 : index
    %c0_2 = arith.constant 0 : index
    %1 = vector.load %arg1[%c0_1, %c0_2] : memref<32x16xf32, #tpu.memory_space<vmem>>, vector<32x16xf32>
    %cst = arith.constant dense<0.000000e+00> : vector<8x16xf32>
    %2 = tpu.matmul %0, %1, %cst {dimension_numbers = #tpu.dot_dimension_numbers<[1], [0], [0], [1], [0, 0, 1, 1], [], []>} : vector<8x32xf32>, vector<32x16xf32>, vector<8x16xf32> -> vector<8x16xf32>
    %c0_3 = arith.constant 0 : index
    %c0_4 = arith.constant 0 : index
    %3 = vector.load %arg2[%c0_3, %c0_4] : memref<32x16xf32, #tpu.memory_space<vmem>>, vector<32x16xf32>
    %cst_5 = arith.constant dense<0.000000e+00> : vector<8x16xf32>
    %4 = tpu.matmul %0, %3, %cst_5 {dimension_numbers = #tpu.dot_dimension_numbers<[1], [0], [0], [1], [0, 0, 1, 1], [], []>} : vector<8x32xf32>, vector<32x16xf32>, vector<8x16xf32> -> vector<8x16xf32>
    %c0_6 = arith.constant 0 : index
    %c0_7 = arith.constant 0 : index
    %5 = vector.load %arg3[%c0_6, %c0_7] : memref<32x16xf32, #tpu.memory_space<vmem>>, vector<32x16xf32>
    %cst_8 = arith.constant dense<0.000000e+00> : vector<8x16xf32>
    %6 = tpu.matmul %0, %5, %cst_8 {dimension_numbers = #tpu.dot_dimension_numbers<[1], [0], [0], [1], [0, 0, 1, 1], [], []>} : vector<8x32xf32>, vector<32x16xf32>, vector<8x16xf32> -> vector<8x16xf32>
    %cst_9 = arith.constant 2.500000e-01 : f32
    %7 = vector.broadcast %cst_9 : f32 to vector<8x16xf32>
    %8 = arith.mulf %2, %7 : vector<8x16xf32>
    %cst_10 = arith.constant dense<0.000000e+00> : vector<8x8xf32>
    %9 = tpu.matmul %8, %4, %cst_10 {dimension_numbers = #tpu.dot_dimension_numbers<[1], [1], [0], [0], [0, 0, 1, 0], [], []>} : vector<8x16xf32>, vector<8x16xf32>, vector<8x8xf32> -> vector<8x8xf32>
    %cst_11 = arith.constant dense<0xFF800000> : vector<8xf32>
    %10 = vector.multi_reduction <maximumf>, %9, %cst_11 [1] : vector<8x8xf32> to vector<8xf32>
    %11 = vector.shape_cast %10 : vector<8xf32> to vector<8x1xf32>
    %12 = vector.broadcast %11 : vector<8x1xf32> to vector<8x8xf32>
    %13 = arith.subf %9, %12 : vector<8x8xf32>
    %14 = math.exp %13 : vector<8x8xf32>
    %cst_12 = arith.constant dense<0.000000e+00> : vector<8xf32>
    %15 = vector.multi_reduction <add>, %14, %cst_12 [1] : vector<8x8xf32> to vector<8xf32>
    %16 = vector.shape_cast %15 : vector<8xf32> to vector<8x1xf32>
    %17 = tpu.reciprocal %16 {approx = true} : vector<8x1xf32> -> vector<8x1xf32>
    %18 = arith.mulf %16, %17 : vector<8x1xf32>
    %cst_13 = arith.constant 2.000000e+00 : f32
    %19 = vector.broadcast %cst_13 : f32 to vector<8x1xf32>
    %20 = arith.subf %19, %18 : vector<8x1xf32>
    %21 = arith.mulf %17, %20 : vector<8x1xf32>
    %cst_14 = arith.constant dense<0.000000e+00> : vector<8x16xf32>
    %22 = tpu.matmul %14, %6, %cst_14 {dimension_numbers = #tpu.dot_dimension_numbers<[1], [0], [0], [1], [0, 0, 1, 1], [], []>} : vector<8x8xf32>, vector<8x16xf32>, vector<8x16xf32> -> vector<8x16xf32>
    %23 = vector.broadcast %21 : vector<8x1xf32> to vector<8x16xf32>
    %24 = arith.mulf %22, %23 : vector<8x16xf32>
    %c0_15 = arith.constant 0 : index
    %c0_16 = arith.constant 0 : index
    %25 = vector.load %arg4[%c0_15, %c0_16] : memref<8x16xf32, #tpu.memory_space<vmem>>, vector<8x16xf32>
    tpu.vector_store %arg4[%c0_15, %c0_16], %24 {strides = array<i32>} : memref<8x16xf32, #tpu.memory_space<vmem>>, vector<8x16xf32>,
    return
  }
}

</mosaic_0001>

<llo_original>
// kernel: tpu_custom_call.1
$region0: #{tpu_custom_call.1}
  #allocation0 [shape = 'u32[]', space=smem, size = 0x4, offset = 0x4, fixed_abs, tag = 'smem constant byte address 0x4 - core index']
  #allocation1 [shape = 'u32[144,128]{1,0:T(1,128)}', space=vmem, size = 0x12000, scoped, tag = 'internal scratch']
  %s0 = inlined_call_operand.vmem [shape: f32[8,32], index: 0, kind: input, shape index: {}]
  %s1 = inlined_call_operand.vmem [shape: f32[32,16], index: 1, kind: input, shape index: {}]
  %s2 = inlined_call_operand.vmem [shape: f32[32,16], index: 2, kind: input, shape index: {}]
  %s3 = inlined_call_operand.vmem [shape: f32[32,16], index: 3, kind: input, shape index: {}]
  %s4 = inlined_call_operand.hbm [shape: f32[8,16], index: 4, kind: output, shape index: {}]
  %s5 = sld [smem:[#allocation0]]
  $region26: #{tpu_custom_call.1} parent=0
    _
  %s7 = ssub.s32 1, %s5
  %s8 = scalar_select 0, %s7, %s5
  $region1: #{tpu_custom_call.1} parent=0
    #allocation2 [shape = 'u8[4096]{0}', space=vmem, size = 0x1000, scoped, tag = 'output window, operand 0, single buffered']
    #allocation3 [shape = 's32[1]{0}', space=sflag, size = 0x4, scoped, tag = 'scoped memory for tpu_custom_call.1']
    %9 = vsyncpa [#allocation3], 0
    // Predicated region
    $region2: #{tpu_custom_call.1} parent=1 // pred_check
      _
    $region3: #{tpu_custom_call.1} parent=1 // pred_check_branch
      %11 = sbr.rel (0) target = $region5
    $region4: #{tpu_custom_call.1} parent=1 // pred_region
      _
    $region5: #{tpu_custom_call.1} parent=1 // pred_fallthru
      _
    // Predicated region
    $region6: #{tpu_custom_call.1} parent=1 // pred_check
      _
    $region7: #{tpu_custom_call.1} parent=1 // pred_check_branch
      %13 = sbr.rel (0) target = $region9
    $region8: #{tpu_custom_call.1} parent=1 // pred_region
      _
    $region9: #{tpu_custom_call.1} parent=1 // pred_fallthru
      _
    // Predicated region
    $region10: #{tpu_custom_call.1} parent=1 // pred_check
      _
    $region11: #{tpu_custom_call.1} parent=1 // pred_check_branch
      %15 = sbr.rel (0) target = $region13
    $region12: #{tpu_custom_call.1} parent=1 // pred_region
      _
    $region13: #{tpu_custom_call.1} parent=1 // pred_fallthru
      _
    // Predicated region
    $region14: #{tpu_custom_call.1} parent=1 // pred_check
      _
    $region15: #{tpu_custom_call.1} parent=1 // pred_check_branch
      %17 = sbr.rel (0) target = $region17
    $region16: #{tpu_custom_call.1} parent=1 // pred_region
      _
    $region17: #{tpu_custom_call.1} parent=1 // pred_fallthru
      _
    %v18 = vld [vmem:[%s0] sm:$0xff]
    %v19 = vld [vmem:[%s1] sm:$0xff]
    %v20 = vld [vmem:[%s1 + $0x8] sm:$0xff]
    %v21 = vld [vmem:[%s1 + $0x10] sm:$0xff]
    %v22 = vld [vmem:[%s1 + $0x18] sm:$0xff]
    %vm23 = vcmask 261120
    %v25 = vsel %vm23, %v18, 0
    %27 = vmatprep.subr.mxu0 0.0
    %28 = vmatpush1.msra.mxu0 0.0
    %29 = vmatprep.subr.mxu0 0.0
    %30 = vmatpush1.msra.mxu0 0.0
    %31 = vmatprep.subr.mxu0 0.0
    %32 = vmatpush1.msra.mxu0 0.0
    %33 = vmatprep.subr.mxu0 0.0
    %34 = vmatpush1.msra.mxu0 0.0
    %35 = vmatprep.subr.mxu0 0.0
    %36 = vmatpush1.msra.mxu0 0.0
    %37 = vmatprep.subr.mxu0 0.0
    %38 = vmatpush1.msra.mxu0 0.0
    %39 = vmatprep.subr.mxu0 0.0
    %40 = vmatpush1.msra.mxu0 0.0
    %41 = vmatprep.subr.mxu0 0.0
    %42 = vmatpush1.msra.mxu0 0.0
    %43 = vmatprep.subr.mxu0 0.0
    %44 = vmatpush1.msra.mxu0 0.0
    %45 = vmatprep.subr.mxu0 0.0
    %46 = vmatpush1.msra.mxu0 0.0
    %47 = vmatprep.subr.mxu0 0.0
    %48 = vmatpush1.msra.mxu0 0.0
    %49 = vmatprep.subr.mxu0 0.0
    %50 = vmatpush1.msra.mxu0 0.0
    %51 = vmatprep.subr.mxu0 0.0
    %52 = vmatpush1.msra.mxu0 %v22
    %53 = vmatprep.subr.mxu0 0.0
    %54 = vmatpush1.msra.mxu0 %v21
    %55 = vmatprep.subr.mxu0 0.0
    %56 = vmatpush1.msra.mxu0 %v20
    %57 = vmatprep.subr.mxu0 0.0
    %58 = vmatpush1.msra.mxu0 %v19
    %59 = vmatprep.subr.mxu0 0.0
    %60 = vmatpush2.msra.mxu0 0.0
    %61 = vmatprep.subr.mxu0 0.0
    %62 = vmatpush2.msra.mxu0 0.0
    %63 = vmatprep.subr.mxu0 0.0
    %64 = vmatpush2.msra.mxu0 0.0
    %65 = vmatprep.subr.mxu0 0.0
    %66 = vmatpush2.msra.mxu0 0.0
    %67 = vmatprep.subr.mxu0 0.0
    %68 = vmatpush2.msra.mxu0 0.0
    %69 = vmatprep.subr.mxu0 0.0
    %70 = vmatpush2.msra.mxu0 0.0
    %71 = vmatprep.subr.mxu0 0.0
    %72 = vmatpush2.msra.mxu0 0.0
    %73 = vmatprep.subr.mxu0 0.0
    %74 = vmatpush2.msra.mxu0 0.0
    %75 = vmatprep.subr.mxu0 0.0
    %76 = vmatpush2.msra.mxu0 0.0
    %77 = vmatprep.subr.mxu0 0.0
    %78 = vmatpush2.msra.mxu0 0.0
    %79 = vmatprep.subr.mxu0 0.0
    %80 = vmatpush2.msra.mxu0 0.0
    %81 = vmatprep.subr.mxu0 0.0
    %82 = vmatpush2.msra.mxu0 0.0
    %83 = vmatprep.subr.mxu0 0.0
    %84 = vmatpush2.msra.mxu0 0.0
    %85 = vmatprep.subr.mxu0 0.0
    %86 = vmatpush2.msra.mxu0 0.0
    %87 = vmatprep.subr.mxu0 0.0
    %88 = vmatpush2.msra.mxu0 0.0
    %89 = vmatprep.subr.mxu0 0.0
    %90 = vmatpush2.msra.mxu0 0.0
    %91 = vmatprep.mubr.f32.mxu0 0.0
    %92 = vmatmul.mubr.f32.gmra.mxu0 %v25
    %v93 = vpop.f32.mrf.mxu0
    %v94 = vadd.f32 0.0, %v93
    %v95 = vpop.f32.mrf.mxu0
    %96 = vdwg.mxu0
    %v97 = vld [vmem:[%s2] sm:$0xff]
    %v98 = vld [vmem:[%s2 + $0x8] sm:$0xff]
    %v99 = vld [vmem:[%s2 + $0x10] sm:$0xff]
    %v100 = vld [vmem:[%s2 + $0x18] sm:$0xff]
    %101 = vmatprep.subr.mxu0 0.0
    %102 = vmatpush1.msra.mxu0 0.0
    %103 = vmatprep.subr.mxu0 0.0
    %104 = vmatpush1.msra.mxu0 0.0
    %105 = vmatprep.subr.mxu0 0.0
    %106 = vmatpush1.msra.mxu0 0.0
    %107 = vmatprep.subr.mxu0 0.0
    %108 = vmatpush1.msra.mxu0 0.0
    %109 = vmatprep.subr.mxu0 0.0
    %110 = vmatpush1.msra.mxu0 0.0
    %111 = vmatprep.subr.mxu0 0.0
    %112 = vmatpush1.msra.mxu0 0.0
    %113 = vmatprep.subr.mxu0 0.0
    %114 = vmatpush1.msra.mxu0 0.0
    %115 = vmatprep.subr.mxu0 0.0
    %116 = vmatpush1.msra.mxu0 0.0
    %117 = vmatprep.subr.mxu0 0.0
    %118 = vmatpush1.msra.mxu0 0.0
    %119 = vmatprep.subr.mxu0 0.0
    %120 = vmatpush1.msra.mxu0 0.0
    %121 = vmatprep.subr.mxu0 0.0
    %122 = vmatpush1.msra.mxu0 0.0
    %123 = vmatprep.subr.mxu0 0.0
    %124 = vmatpush1.msra.mxu0 0.0
    %125 = vmatprep.subr.mxu0 0.0
    %126 = vmatpush1.msra.mxu0 %v100
    %127 = vmatprep.subr.mxu0 0.0
    %128 = vmatpush1.msra.mxu0 %v99
    %129 = vmatprep.subr.mxu0 0.0
    %130 = vmatpush1.msra.mxu0 %v98
    %131 = vmatprep.subr.mxu0 0.0
    %132 = vmatpush1.msra.mxu0 %v97
    %133 = vmatprep.subr.mxu0 0.0
    %134 = vmatpush2.msra.mxu0 0.0
    %135 = vmatprep.subr.mxu0 0.0
    %136 = vmatpush2.msra.mxu0 0.0
    %137 = vmatprep.subr.mxu0 0.0
    %138 = vmatpush2.msra.mxu0 0.0
    %139 = vmatprep.subr.mxu0 0.0
    %140 = vmatpush2.msra.mxu0 0.0
    %141 = vmatprep.subr.mxu0 0.0
    %142 = vmatpush2.msra.mxu0 0.0
    %143 = vmatprep.subr.mxu0 0.0
    %144 = vmatpush2.msra.mxu0 0.0
    %145 = vmatprep.subr.mxu0 0.0
    %146 = vmatpush2.msra.mxu0 0.0
    %147 = vmatprep.subr.mxu0 0.0
    %148 = vmatpush2.msra.mxu0 0.0
    %149 = vmatprep.subr.mxu0 0.0
    %150 = vmatpush2.msra.mxu0 0.0
    %151 = vmatprep.subr.mxu0 0.0
    %152 = vmatpush2.msra.mxu0 0.0
    %153 = vmatprep.subr.mxu0 0.0
    %154 = vmatpush2.msra.mxu0 0.0
    %155 = vmatprep.subr.mxu0 0.0
    %156 = vmatpush2.msra.mxu0 0.0
    %157 = vmatprep.subr.mxu0 0.0
    %158 = vmatpush2.msra.mxu0 0.0
    %159 = vmatprep.subr.mxu0 0.0
    %160 = vmatpush2.msra.mxu0 0.0
    %161 = vmatprep.subr.mxu0 0.0
    %162 = vmatpush2.msra.mxu0 0.0
    %163 = vmatprep.subr.mxu0 0.0
    %164 = vmatpush2.msra.mxu0 0.0
    %165 = vmatprep.mubr.f32.mxu0 0.0
    %166 = vmatmul.mubr.f32.gmra.mxu0 %v25
    %v167 = vpop.f32.mrf.mxu0
    %v168 = vadd.f32 0.0, %v167
    %v169 = vpop.f32.mrf.mxu0
    %170 = vdwg.mxu0
    %v171 = vld [vmem:[%s3] sm:$0xff]
    %v172 = vld [vmem:[%s3 + $0x8] sm:$0xff]
    %v173 = vld [vmem:[%s3 + $0x10] sm:$0xff]
    %v174 = vld [vmem:[%s3 + $0x18] sm:$0xff]
    %175 = vmatprep.subr.mxu0 0.0
    %176 = vmatpush1.msra.mxu0 0.0
    %177 = vmatprep.subr.mxu0 0.0
    %178 = vmatpush1.msra.mxu0 0.0
    %179 = vmatprep.subr.mxu0 0.0
    %180 = vmatpush1.msra.mxu0 0.0
    %181 = vmatprep.subr.mxu0 0.0
    %182 = vmatpush1.msra.mxu0 0.0
    %183 = vmatprep.subr.mxu0 0.0
    %184 = vmatpush1.msra.mxu0 0.0
    %185 = vmatprep.subr.mxu0 0.0
    %186 = vmatpush1.msra.mxu0 0.0
    %187 = vmatprep.subr.mxu0 0.0
    %188 = vmatpush1.msra.mxu0 0.0
    %189 = vmatprep.subr.mxu0 0.0
    %190 = vmatpush1.msra.mxu0 0.0
    %191 = vmatprep.subr.mxu0 0.0
    %192 = vmatpush1.msra.mxu0 0.0
    %193 = vmatprep.subr.mxu0 0.0
    %194 = vmatpush1.msra.mxu0 0.0
    %195 = vmatprep.subr.mxu0 0.0
    %196 = vmatpush1.msra.mxu0 0.0
    %197 = vmatprep.subr.mxu0 0.0
    %198 = vmatpush1.msra.mxu0 0.0
    %199 = vmatprep.subr.mxu0 0.0
    %200 = vmatpush1.msra.mxu0 %v174
    %201 = vmatprep.subr.mxu0 0.0
    %202 = vmatpush1.msra.mxu0 %v173
    %203 = vmatprep.subr.mxu0 0.0
    %204 = vmatpush1.msra.mxu0 %v172
    %205 = vmatprep.subr.mxu0 0.0
    %206 = vmatpush1.msra.mxu0 %v171
    %207 = vmatprep.subr.mxu0 0.0
    %208 = vmatpush2.msra.mxu0 0.0
    %209 = vmatprep.subr.mxu0 0.0
    %210 = vmatpush2.msra.mxu0 0.0
    %211 = vmatprep.subr.mxu0 0.0
    %212 = vmatpush2.msra.mxu0 0.0
    %213 = vmatprep.subr.mxu0 0.0
    %214 = vmatpush2.msra.mxu0 0.0
    %215 = vmatprep.subr.mxu0 0.0
    %216 = vmatpush2.msra.mxu0 0.0
    %217 = vmatprep.subr.mxu0 0.0
    %218 = vmatpush2.msra.mxu0 0.0
    %219 = vmatprep.subr.mxu0 0.0
    %220 = vmatpush2.msra.mxu0 0.0
    %221 = vmatprep.subr.mxu0 0.0
    %222 = vmatpush2.msra.mxu0 0.0
    %223 = vmatprep.subr.mxu0 0.0
    %224 = vmatpush2.msra.mxu0 0.0
    %225 = vmatprep.subr.mxu0 0.0
    %226 = vmatpush2.msra.mxu0 0.0
    %227 = vmatprep.subr.mxu0 0.0
    %228 = vmatpush2.msra.mxu0 0.0
    %229 = vmatprep.subr.mxu0 0.0
    %230 = vmatpush2.msra.mxu0 0.0
    %231 = vmatprep.subr.mxu0 0.0
    %232 = vmatpush2.msra.mxu0 0.0
    %233 = vmatprep.subr.mxu0 0.0
    %234 = vmatpush2.msra.mxu0 0.0
    %235 = vmatprep.subr.mxu0 0.0
    %236 = vmatpush2.msra.mxu0 0.0
    %237 = vmatprep.subr.mxu0 0.0
    %238 = vmatpush2.msra.mxu0 0.0
    %239 = vmatprep.mubr.f32.mxu0 0.0
    %240 = vmatmul.mubr.f32.gmra.mxu0 %v25
    %v241 = vpop.f32.mrf.mxu0
    %v242 = vadd.f32 0.0, %v241
    %v243 = vpop.f32.mrf.mxu0
    %244 = vdwg.mxu0
    %v245 = vmul.f32 %v94, 0.25
    %vm246 = vcmask 130048
    %v248 = vsel %vm246, %v245, 0
    %v251 = vsel %vm246, %v168, 0
    %253 = vmatprep.subr.mxu0 0.0
    %254 = vmatpush1.xpose.msra.mxu0 0.0
    %255 = vmatprep.subr.mxu0 0.0
    %256 = vmatpush1.xpose.msra.mxu0 0.0
    %257 = vmatprep.subr.mxu0 0.0
    %258 = vmatpush1.xpose.msra.mxu0 0.0
    %259 = vmatprep.subr.mxu0 0.0
    %260 = vmatpush1.xpose.msra.mxu0 0.0
    %261 = vmatprep.subr.mxu0 0.0
    %262 = vmatpush1.xpose.msra.mxu0 0.0
    %263 = vmatprep.subr.mxu0 0.0
    %264 = vmatpush1.xpose.msra.mxu0 0.0
    %265 = vmatprep.subr.mxu0 0.0
    %266 = vmatpush1.xpose.msra.mxu0 0.0
    %267 = vmatprep.subr.mxu0 0.0
    %268 = vmatpush1.xpose.msra.mxu0 0.0
    %269 = vmatprep.subr.mxu0 0.0
    %270 = vmatpush1.xpose.msra.mxu0 0.0
    %271 = vmatprep.subr.mxu0 0.0
    %272 = vmatpush1.xpose.msra.mxu0 0.0
    %273 = vmatprep.subr.mxu0 0.0
    %274 = vmatpush1.xpose.msra.mxu0 0.0
    %275 = vmatprep.subr.mxu0 0.0
    %276 = vmatpush1.xpose.msra.mxu0 0.0
    %277 = vmatprep.subr.mxu0 0.0
    %278 = vmatpush1.xpose.msra.mxu0 0.0
    %279 = vmatprep.subr.mxu0 0.0
    %280 = vmatpush1.xpose.msra.mxu0 0.0
    %281 = vmatprep.subr.mxu0 0.0
    %282 = vmatpush1.xpose.msra.mxu0 0.0
    %283 = vmatprep.subr.mxu0 0.0
    %284 = vmatpush1.xpose.msra.mxu0 %v251
    %285 = vmatprep.subr.mxu0 0.0
    %286 = vmatpush2.xpose.msra.mxu0 0.0
    %287 = vmatprep.subr.mxu0 0.0
    %288 = vmatpush2.xpose.msra.mxu0 0.0
    %289 = vmatprep.subr.mxu0 0.0
    %290 = vmatpush2.xpose.msra.mxu0 0.0
    %291 = vmatprep.subr.mxu0 0.0
    %292 = vmatpush2.xpose.msra.mxu0 0.0
    %293 = vmatprep.subr.mxu0 0.0
    %294 = vmatpush2.xpose.msra.mxu0 0.0
    %295 = vmatprep.subr.mxu0 0.0
    %296 = vmatpush2.xpose.msra.mxu0 0.0
    %297 = vmatprep.subr.mxu0 0.0
    %298 = vmatpush2.xpose.msra.mxu0 0.0
    %299 = vmatprep.subr.mxu0 0.0
    %300 = vmatpush2.xpose.msra.mxu0 0.0
    %301 = vmatprep.subr.mxu0 0.0
    %302 = vmatpush2.xpose.msra.mxu0 0.0
    %303 = vmatprep.subr.mxu0 0.0
    %304 = vmatpush2.xpose.msra.mxu0 0.0
    %305 = vmatprep.subr.mxu0 0.0
    %306 = vmatpush2.xpose.msra.mxu0 0.0
    %307 = vmatprep.subr.mxu0 0.0
    %308 = vmatpush2.xpose.msra.mxu0 0.0
    %309 = vmatprep.subr.mxu0 0.0
    %310 = vmatpush2.xpose.msra.mxu0 0.0
    %311 = vmatprep.subr.mxu0 0.0
    %312 = vmatpush2.xpose.msra.mxu0 0.0
    %313 = vmatprep.subr.mxu0 0.0
    %314 = vmatpush2.xpose.msra.mxu0 0.0
    %315 = vmatprep.subr.mxu0 0.0
    %316 = vmatpush2.xpose.msra.mxu0 0.0
    %317 = vmatprep.mubr.f32.mxu0 0.0
    %318 = vmatmul.mubr.f32.gmra.mxu0 %v248
    %v319 = vpop.f32.mrf.mxu0
    %v320 = vadd.f32 0.0, %v319
    %v321 = vpop.f32.mrf.mxu0
    %322 = vdwg.mxu0
    %vm323 = vcmask 64512
    %v324 = vsel %vm323, %v320, -inf
    %325 = vmax.xlane.f32.xlu0 %v324
    %v326 = vpop.xlane.xlu0 %325
    %v327 = vsub.f32 %v320, %v326
    %v328 = vmul.f32 %v327, 1.442695
    %v329 = vpow.pop %v328
    %v330 = vsel %vm323, %v329, 0.0
    %331 = vadd.xlane.f32.xlu0 %v330
    %v332 = vpop.xlane.xlu0 %331
    %v333 = vrcp.pop %v332
    %v334 = vmul.f32 %v332, %v333
    %v335 = vsub.f32 2.0, %v334
    %v336 = vmul.f32 %v333, %v335
    %v338 = vsel %vm323, %v329, 0
    %340 = vmatprep.subr.mxu0 0.0
    %341 = vmatpush1.msra.mxu0 0.0
    %342 = vmatprep.subr.mxu0 0.0
    %343 = vmatpush1.msra.mxu0 0.0
    %344 = vmatprep.subr.mxu0 0.0
    %345 = vmatpush1.msra.mxu0 0.0
    %346 = vmatprep.subr.mxu0 0.0
    %347 = vmatpush1.msra.mxu0 0.0
    %348 = vmatprep.subr.mxu0 0.0
    %349 = vmatpush1.msra.mxu0 0.0
    %350 = vmatprep.subr.mxu0 0.0
    %351 = vmatpush1.msra.mxu0 0.0
    %352 = vmatprep.subr.mxu0 0.0
    %353 = vmatpush1.msra.mxu0 0.0
    %354 = vmatprep.subr.mxu0 0.0
    %355 = vmatpush1.msra.mxu0 0.0
    %356 = vmatprep.subr.mxu0 0.0
    %357 = vmatpush1.msra.mxu0 0.0
    %358 = vmatprep.subr.mxu0 0.0
    %359 = vmatpush1.msra.mxu0 0.0
    %360 = vmatprep.subr.mxu0 0.0
    %361 = vmatpush1.msra.mxu0 0.0
    %362 = vmatprep.subr.mxu0 0.0
    %363 = vmatpush1.msra.mxu0 0.0
    %364 = vmatprep.subr.mxu0 0.0
    %365 = vmatpush1.msra.mxu0 0.0
    %366 = vmatprep.subr.mxu0 0.0
    %367 = vmatpush1.msra.mxu0 0.0
    %368 = vmatprep.subr.mxu0 0.0
    %369 = vmatpush1.msra.mxu0 0.0
    %370 = vmatprep.subr.mxu0 0.0
    %371 = vmatpush1.msra.mxu0 %v242
    %372 = vmatprep.subr.mxu0 0.0
    %373 = vmatpush2.msra.mxu0 0.0
    %374 = vmatprep.subr.mxu0 0.0
    %375 = vmatpush2.msra.mxu0 0.0
    %376 = vmatprep.subr.mxu0 0.0
    %377 = vmatpush2.msra.mxu0 0.0
    %378 = vmatprep.subr.mxu0 0.0
    %379 = vmatpush2.msra.mxu0 0.0
    %380 = vmatprep.subr.mxu0 0.0
    %381 = vmatpush2.msra.mxu0 0.0
    %382 = vmatprep.subr.mxu0 0.0
    %383 = vmatpush2.msra.mxu0 0.0
    %384 = vmatprep.subr.mxu0 0.0
    %385 = vmatpush2.msra.mxu0 0.0
    %386 = vmatprep.subr.mxu0 0.0
    %387 = vmatpush2.msra.mxu0 0.0
    %388 = vmatprep.subr.mxu0 0.0
    %389 = vmatpush2.msra.mxu0 0.0
    %390 = vmatprep.subr.mxu0 0.0
    %391 = vmatpush2.msra.mxu0 0.0
    %392 = vmatprep.subr.mxu0 0.0
    %393 = vmatpush2.msra.mxu0 0.0
    %394 = vmatprep.subr.mxu0 0.0
    %395 = vmatpush2.msra.mxu0 0.0
    %396 = vmatprep.subr.mxu0 0.0
    %397 = vmatpush2.msra.mxu0 0.0
    %398 = vmatprep.subr.mxu0 0.0
    %399 = vmatpush2.msra.mxu0 0.0
    %400 = vmatprep.subr.mxu0 0.0
    %401 = vmatpush2.msra.mxu0 0.0
    %402 = vmatprep.subr.mxu0 0.0
    %403 = vmatpush2.msra.mxu0 0.0
    %404 = vmatprep.mubr.f32.mxu0 0.0
    %405 = vmatmul.mubr.f32.gmra.mxu0 %v338
    %v406 = vpop.f32.mrf.mxu0
    %v407 = vadd.f32 0.0, %v406
    %v408 = vpop.f32.mrf.mxu0
    %409 = vdwg.mxu0
    %v410 = vmul.f32 %v407, %v336
    %411 = vst.msk [vmem:[#allocation2] sm:$0xff] %vm246, %v410
    // Predicated region
    $region18: #{tpu_custom_call.1} parent=1 // pred_check
      _
    $region19: #{tpu_custom_call.1} parent=1 // pred_check_branch
      %413 = sbr.rel (0) target = $region21
    $region20: #{tpu_custom_call.1} parent=1 // pred_region
      %s415 = ssub.s32 128, 128
      %416 = vsyncadd [#allocation3], %s415
      %s418 = sshll.u32 [#allocation2], 4
      %s419 = int_to_ptr.vmem [resolvable:$true] %s418
      %421 = dma.vmem_to_hbm [thread:$0]  %s419, 128, %s4, [#allocation3]
    $region21: #{tpu_custom_call.1} parent=1 // pred_fallthru
      _
    // Predicated region
    $region22: #{tpu_custom_call.1} parent=1 // pred_check
      _
    $region23: #{tpu_custom_call.1} parent=1 // pred_check_branch
      %423 = sbr.rel (0) target = $region25
    $region24: #{tpu_custom_call.1} parent=1 // pred_region
      %424 = dma.done [#allocation3], 128
    $region25: #{tpu_custom_call.1} parent=1 // pred_fallthru
      _
    %425 = vsyncpa [#allocation3], 1

</llo_original>
